<compile_context>
chip_gen: v6e
topology: v6e:2x2x1
jax: 0.10.0
libtpu: 0.0.40
codegen_flags: <defaults>
</compile_context>

<pallas_src>
import functools

import jax
import jax.numpy as jnp
from jax.experimental import pallas as pl
from jax.experimental.pallas import tpu as pltpu

_LANES = 128
_MIN_BLOCK_BYTES = 512 * 1024          # keep blocks >= ~512 KiB when splitting
_VMEM_LIMIT_BYTES = 40 * 1024 * 1024   # 3 streams x 2 bufs x <=4 MiB + scratch


def _inf_norm_kernel(eps_ref, x_ref, lower_ref, upper_ref):
    # Compute in f32 regardless of storage dtype so eps is not rounded to the
    # input precision (matters for bf16/fp8 inputs); cast only at the store.
    x = x_ref[...].astype(jnp.float32)
    eps_v = eps_ref[0, 0]
    lower_ref[...] = jnp.maximum(x - eps_v, 0.0).astype(lower_ref.dtype)
    upper_ref[...] = jnp.minimum(x + eps_v, 1.0).astype(upper_ref.dtype)


def _round_up(v, m):
    return ((v + m - 1) // m) * m


def _choose_tile_rows(rows, sub, itemsize, max_tile_rows):
    """Block height for a (rows, 128) slab: multiple of `sub`, or full extent."""
    min_tr = _round_up(max(sub, _MIN_BLOCK_BYTES // (_LANES * itemsize)), sub)
    max_tr = _round_up(max(min_tr, max_tile_rows), sub)
    if rows <= min_tr:
        return rows                      # one full-extent block (tiny input)
    # Prefer an even step count >= 8 so both v7x TensorCores get balanced work
    # with pipeline overlap; fall back to smaller even counts while blocks
    # stay >= ~512 KiB. Large arrays land on ~max_tile_rows, even step counts.
    steps_for_max = 2 * pl.cdiv(pl.cdiv(rows, max_tr), 2)   # even, covers rows
    for steps in (max(8, steps_for_max), 8, 6, 4, 2):
        tr = _round_up(pl.cdiv(rows, steps), sub)
        if min_tr <= tr <= max_tr and tr < rows:
            return tr
    return rows if rows <= max_tr else max_tr


@functools.partial(jax.jit, static_argnames=("tile_rows",))
def infinity_norm_layer(x, eps, tile_rows=8192):
    """Return (lower, upper) = (max(x - eps, 0), min(x + eps, 1))."""
    orig_shape = x.shape
    dtype = x.dtype
    total = x.size
    eps32 = jnp.asarray(eps, jnp.float32)

    # Totals not divisible by 128 lanes cannot form a lane-dense (rows, 128)
    # view without a pad copy. Rather than paying an extra R+W for the pad
    # plus an R+W per output slice (~2x HBM traffic), let XLA's fused
    # elementwise path handle them — it is already 1R+2W bandwidth-optimal.
    # (Typical NCHW activation sizes are 128-divisible and take the kernel.)
    if total == 0 or total % _LANES != 0:
        xf = x.astype(jnp.float32)
        lower = jnp.maximum(xf - eps32, 0.0).astype(dtype)
        upper = jnp.minimum(xf + eps32, 1.0).astype(dtype)
        return lower, upper

    itemsize = jnp.dtype(dtype).itemsize
    sub = max(8, 32 // itemsize)         # sublane multiple: 8 f32, 16 bf16, 32 i8
    rows = total // _LANES
    x2d = x.reshape(rows, _LANES)        # free lane-dense view, no copy

    tr = _choose_tile_rows(rows, sub, itemsize, tile_rows)
    num_steps = pl.cdiv(rows, tr)        # ragged last block handled by Pallas

    eps_arr = eps32.reshape(1, 1)

    lower2d, upper2d = pl.pallas_call(
        _inf_norm_kernel,
        out_shape=(
            jax.ShapeDtypeStruct((rows, _LANES), dtype),
            jax.ShapeDtypeStruct((rows, _LANES), dtype),
        ),
        grid_spec=pltpu.PrefetchScalarGridSpec(
            num_scalar_prefetch=0,
            grid=(num_steps,),
            in_specs=[
                # eps as a runtime SMEM scalar: no recompile per eps value,
                # works with traced eps too.
                pl.BlockSpec(memory_space=pltpu.MemorySpace.SMEM),
                # Note: pipeline_mode=pl.Buffered(3) on this read stream is a
                # possible 0-3% knob (one read vs two write-back streams);
                # kept at default depth to stay well inside v7x's VMEM budget.
                pl.BlockSpec((tr, _LANES), lambda i: (i, 0)),
            ],
            out_specs=[
                pl.BlockSpec((tr, _LANES), lambda i: (i, 0)),
                pl.BlockSpec((tr, _LANES), lambda i: (i, 0)),
            ],
        ),
        compiler_params=pltpu.CompilerParams(
            dimension_semantics=("parallel",),
            # 3 streams x 2 buffers x <=4 MiB blocks ~= 24 MiB + Mosaic
            # scratch: fits v7x's 64 MiB physical VMEM with headroom and
            # keeps v5e clear of its 16 MiB scoped-VMEM default.
            vmem_limit_bytes=_VMEM_LIMIT_BYTES,
        ),
        cost_estimate=pl.CostEstimate(
            flops=4 * total,
            transcendentals=0,
            bytes_accessed=3 * total * itemsize,
        ),
    )(eps_arr, x2d)

    return lower2d.reshape(orig_shape), upper2d.reshape(orig_shape)


if __name__ == "__main__":
    def check(x, eps):
        lower, upper = infinity_norm_layer(x, eps)
        jax.block_until_ready((lower, upper))
        ref_lower = jnp.maximum(x - eps, 0.0)
        ref_upper = jnp.minimum(x + eps, 1.0)
        assert lower.shape == x.shape and upper.shape == x.shape
        assert jnp.allclose(lower, ref_lower, atol=1e-6)
        assert jnp.allclose(upper, ref_upper, atol=1e-6)

    # NCHW input with values roughly in [0, 1], like a normalized image.
    x = jax.random.uniform(jax.random.PRNGKey(0), (2, 4, 16, 16), dtype=jnp.float32)
    check(x, 0.1)

    # 128-aligned total but row count (15) not a sublane multiple: exercises
    # the full-extent / non-multiple-of-8 block path with zero wrapper copies.
    x2 = jax.random.uniform(jax.random.PRNGKey(1), (3, 5, 8, 16), dtype=jnp.float32)
    check(x2, 0.03)

    # Not 128-divisible (e.g. MNIST 1x28x28 = 784): fused-XLA fallback path.
    x3 = jax.random.uniform(jax.random.PRNGKey(2), (1, 1, 28, 28), dtype=jnp.float32)
    check(x3, 0.05)

    print("KERNEL_OK")
</pallas_src>

<mosaic_0001>
module attributes {stable_mosaic.version = 11 : i64} {
  func.func @_inf_norm_kernel(%arg0: i32, %arg1: memref<1x1xf32, #tpu.memory_space<smem>>, %arg2: memref<16x128xf32, #tpu.memory_space<vmem>>, %arg3: memref<16x128xf32, #tpu.memory_space<vmem>>, %arg4: memref<16x128xf32, #tpu.memory_space<vmem>>) attributes {dimension_semantics = [#tpu.dimension_semantics<parallel>], iteration_bounds = array<i64: 1>, scalar_prefetch = 0 : i64, scratch_operands = 0 : i64, tpu.core_type = #tpu.core_type<tc>, window_params = [{transform_indices = @transform_0, window_bounds = array<i64: 1, 1>}, {transform_indices = @transform_1, window_bounds = array<i64: 16, 128>}, {transform_indices = @transform_2, window_bounds = array<i64: 16, 128>}, {transform_indices = @transform_3, window_bounds = array<i64: 16, 128>}]} {
    %c0 = arith.constant 0 : index
    %c0_0 = arith.constant 0 : index
    %0 = vector.load %arg2[%c0, %c0_0] : memref<16x128xf32, #tpu.memory_space<vmem>>, vector<16x128xf32>
    %c0_1 = arith.constant 0 : index
    %c0_2 = arith.constant 0 : index
    %1 = memref.load %arg1[%c0_1, %c0_2] : memref<1x1xf32, #tpu.memory_space<smem>>
    %2 = vector.broadcast %1 : f32 to vector<16x128xf32>
    %3 = arith.subf %0, %2 : vector<16x128xf32>
    %cst = arith.constant 0.000000e+00 : f32
    %4 = vector.broadcast %cst : f32 to vector<16x128xf32>
    %5 = arith.maximumf %3, %4 : vector<16x128xf32>
    %c0_3 = arith.constant 0 : index
    %c0_4 = arith.constant 0 : index
    %6 = vector.load %arg3[%c0_3, %c0_4] : memref<16x128xf32, #tpu.memory_space<vmem>>, vector<16x128xf32>
    tpu.vector_store %arg3[%c0_3, %c0_4], %5 {strides = array<i32>} : memref<16x128xf32, #tpu.memory_space<vmem>>, vector<16x128xf32>,
    %7 = vector.broadcast %1 : f32 to vector<16x128xf32>
    %8 = arith.addf %0, %7 : vector<16x128xf32>
    %cst_5 = arith.constant 1.000000e+00 : f32
    %9 = vector.broadcast %cst_5 : f32 to vector<16x128xf32>
    %10 = arith.minimumf %8, %9 : vector<16x128xf32>
    %c0_6 = arith.constant 0 : index
    %c0_7 = arith.constant 0 : index
    %11 = vector.load %arg4[%c0_6, %c0_7] : memref<16x128xf32, #tpu.memory_space<vmem>>, vector<16x128xf32>
    tpu.vector_store %arg4[%c0_6, %c0_7], %10 {strides = array<i32>} : memref<16x128xf32, #tpu.memory_space<vmem>>, vector<16x128xf32>,
    return
  }
  func.func @transform_0(%arg0: i32) -> (i32, i32) {
    %c0_i32 = arith.constant 0 : i32
    %c0_i32_0 = arith.constant 0 : i32
    %c0_i32_1 = arith.constant 0 : i32
    return %c0_i32, %c0_i32_0 : i32, i32
  }
  func.func @transform_1(%arg0: i32) -> (i32, i32) {
    %c0_i32 = arith.constant 0 : i32
    %c0_i32_0 = arith.constant 0 : i32
    return %arg0, %c0_i32 : i32, i32
  }
  func.func @transform_2(%arg0: i32) -> (i32, i32) {
    %c0_i32 = arith.constant 0 : i32
    %c0_i32_0 = arith.constant 0 : i32
    return %arg0, %c0_i32 : i32, i32
  }
  func.func @transform_3(%arg0: i32) -> (i32, i32) {
    %c0_i32 = arith.constant 0 : i32
    %c0_i32_0 = arith.constant 0 : i32
    return %arg0, %c0_i32 : i32, i32
  }
}

</mosaic_0001>

<llo_original>
// kernel: infinity_norm_layer.1
$region0: #{infinity_norm_layer.1}
  #allocation0 [shape = 'u32[]', space=smem, size = 0x4, offset = 0x4, fixed_abs, tag = 'smem constant byte address 0x4 - core index']
  #allocation1 [shape = 'u32[144,128]{1,0:T(1,128)}', space=vmem, size = 0x12000, scoped, tag = 'internal scratch']
  #allocation2 [shape = 'f32[1,1]{1,0:T(1,128)S(6)}', space=smem, size = 0x200, scoped, tag = 'scoped memory for infinity_norm_layer.1']
  %s0 = inlined_call_operand.<no memory space> [shape: f32[1,1], index: 0, kind: input, shape index: {}]
  %s1 = inlined_call_operand.vmem [shape: f32[16,128], index: 1, kind: input, shape index: {}]
  %s2 = inlined_call_operand.vmem [shape: f32[16,128], index: 2, kind: output, shape index: {0}]
  %s3 = inlined_call_operand.vmem [shape: f32[16,128], index: 3, kind: output, shape index: {1}]
  %4 = xla_tuple %s2, %s3
  %s5 = sld [smem:[#allocation0]]
  $region26: #{infinity_norm_layer.1} parent=0
    _
  %s7 = ssub.s32 1, %s5
  %s8 = scalar_select 0, %s7, %s5
  %9 = sst [smem:[#allocation2]] %s0
  // Predicated region
  $region2: #{infinity_norm_layer.1} parent=0 // pred_check
    _
  $region3: #{infinity_norm_layer.1} parent=0 // pred_check_branch
    %11 = sbr.rel (0) target = $region5
  $region4: #{infinity_norm_layer.1} parent=0 // pred_region
    _
  $region5: #{infinity_norm_layer.1} parent=0 // pred_fallthru
    _
  // Predicated region
  $region6: #{infinity_norm_layer.1} parent=0 // pred_check
    _
  $region7: #{infinity_norm_layer.1} parent=0 // pred_check_branch
    %13 = sbr.rel (0) target = $region9
  $region8: #{infinity_norm_layer.1} parent=0 // pred_region
    _
  $region9: #{infinity_norm_layer.1} parent=0 // pred_fallthru
    _
  %v14 = vld [vmem:[%s1] sm:$0xff]
  %v15 = vld [vmem:[%s1 + $0x8] sm:$0xff]
  %s16 = sld [smem:[#allocation2]]
  %v17 = vstv %s16
  %v18 = vsub.f32 %v14, %v17
  %v19 = vsub.f32 %v15, %v17
  %v20 = vmax.f32 %v18, 0.0
  %v21 = vmax.f32 %v19, 0.0
  %22 = vst [vmem:[%s2] sm:$0xff] %v20
  %23 = vst [vmem:[%s2 + $0x8] sm:$0xff] %v21
  %v24 = vadd.f32 %v14, %v17
  %v25 = vadd.f32 %v15, %v17
  %v26 = vmin.f32 %v24, 1.0
  %v27 = vmin.f32 %v25, 1.0
  %28 = vst [vmem:[%s3] sm:$0xff] %v26
  %29 = vst [vmem:[%s3 + $0x8] sm:$0xff] %v27
  // Predicated region
  $region10: #{infinity_norm_layer.1} parent=0 // pred_check
    _
  $region11: #{infinity_norm_layer.1} parent=0 // pred_check_branch
    %31 = sbr.rel (0) target = $region13
  $region12: #{infinity_norm_layer.1} parent=0 // pred_region
    _
  $region13: #{infinity_norm_layer.1} parent=0 // pred_fallthru
    _
  // Predicated region
  $region14: #{infinity_norm_layer.1} parent=0 // pred_check
    _
  $region15: #{infinity_norm_layer.1} parent=0 // pred_check_branch
    %33 = sbr.rel (0) target = $region17
  $region16: #{infinity_norm_layer.1} parent=0 // pred_region
    _
  $region17: #{infinity_norm_layer.1} parent=0 // pred_fallthru
    _
  // Predicated region
  $region18: #{infinity_norm_layer.1} parent=0 // pred_check
    _
  $region19: #{infinity_norm_layer.1} parent=0 // pred_check_branch
    %35 = sbr.rel (0) target = $region21
  $region20: #{infinity_norm_layer.1} parent=0 // pred_region
    _
  $region21: #{infinity_norm_layer.1} parent=0 // pred_fallthru
    _
  // Predicated region
  $region22: #{infinity_norm_layer.1} parent=0 // pred_check
    _
  $region23: #{infinity_norm_layer.1} parent=0 // pred_check_branch
    %37 = sbr.rel (0) target = $region25
  $region24: #{infinity_norm_layer.1} parent=0 // pred_region
    _
  $region25: #{infinity_norm_layer.1} parent=0 // pred_fallthru
    _

</llo_original>
